<compile_context>
chip_gen: v6e
topology: v6e:2x2x1
jax: 0.10.0
libtpu: 0.0.40
codegen_flags: <defaults>
</compile_context>

<pallas_src>
import math
from functools import partial

import jax
import jax.numpy as jnp
from jax import lax
from jax.experimental import pallas as pl
from jax.experimental.pallas import tpu as pltpu

# Safe on v7x (64 MiB physical VMEM/TC), ample headroom on v5e/v6e (128 MiB).
_VMEM_LIMIT_BYTES = 48 * 1024 * 1024
# MXU operand dtype; accumulation / softmax statistics are always f32.
_DEFAULT_COMPUTE_DTYPE = jnp.bfloat16


def _pick_tile(dim, target, align):
    """Largest tile <= target that divides `dim` and is a multiple of `align`.

    Falls back to the full dimension (which always satisfies Mosaic's (8,128)
    block constraint)."""
    if dim <= target:
        return dim
    t = (target // align) * align
    while t >= align:
        if dim % t == 0:
            return t
        t -= align
    return dim


# ----------------------------------------------------------------------------
# Kernel 1: tiled dense projection  y = x @ W + b
# ----------------------------------------------------------------------------
def _linear_kernel(x_ref, w_ref, b_ref, o_ref, acc_ref, *, compute_dtype):
    @pl.when(pl.program_id(2) == 0)
    def _init():
        acc_ref[...] = jnp.zeros_like(acc_ref)

    x = x_ref[...].astype(compute_dtype)
    w = w_ref[...].astype(compute_dtype)
    acc_ref[...] += jnp.dot(x, w, preferred_element_type=jnp.float32)

    @pl.when(pl.program_id(2) == pl.num_programs(2) - 1)
    def _finalize():
        y = acc_ref[...] + b_ref[...].astype(jnp.float32)
        o_ref[...] = y.astype(o_ref.dtype)


def linear(x, w, b, *, compute_dtype=_DEFAULT_COMPUTE_DTYPE, out_dtype=None,
           tm=512, tn=512, tk=512):
    """x: (M, Din), w: (Din, Dout), b: (Dout,) -> (M, Dout) in out_dtype."""
    M, Din = x.shape
    Dout = w.shape[1]
    out_dtype = out_dtype or x.dtype

    tm = _pick_tile(M, tm, 8)       # second-minor of x / out blocks
    tn = _pick_tile(Dout, tn, 128)  # minor of w / out / bias blocks
    tk = _pick_tile(Din, tk, 128)   # minor of x block, second-minor of w block
    grid = (M // tm, Dout // tn, Din // tk)

    kernel = partial(_linear_kernel, compute_dtype=compute_dtype)
    return pl.pallas_call(
        kernel,
        out_shape=jax.ShapeDtypeStruct((M, Dout), out_dtype),
        grid_spec=pltpu.PrefetchScalarGridSpec(
            num_scalar_prefetch=0,
            grid=grid,
            in_specs=[
                pl.BlockSpec((tm, tk), lambda i, j, k: (i, k)),
                pl.BlockSpec((tk, tn), lambda i, j, k: (k, j)),
                pl.BlockSpec((1, tn), lambda i, j, k: (0, j)),
            ],
            out_specs=pl.BlockSpec((tm, tn), lambda i, j, k: (i, j)),
            scratch_shapes=[pltpu.VMEM((tm, tn), jnp.float32)],
        ),
        compiler_params=pltpu.CompilerParams(
            dimension_semantics=("parallel", "parallel", "arbitrary"),
            vmem_limit_bytes=_VMEM_LIMIT_BYTES,
        ),
    )(x, w, b.reshape(1, Dout))


# ----------------------------------------------------------------------------
# Kernel 2: flash-style multi-head attention
#   grid = (B, L/tq, S/ts); KV axis last ("arbitrary"); running max/sum per
#   head + one lane-dense (tq, H*d_v) f32 accumulator live in VMEM scratch.
#   All H heads of a batch row are processed per grid step from the
#   un-transposed lane-dense (tile, H*d) projection outputs; the output is a
#   single full-width lane-dense store.
# ----------------------------------------------------------------------------
def _flash_attn_kernel(q_ref, k_ref, v_ref, o_ref, m_ref, l_ref, acc_ref,
                       *, n_heads, d_k, d_v, compute_dtype, approx_recip):
    kv_i = pl.program_id(2)

    @pl.when(kv_i == 0)
    def _init():
        m_ref[...] = jnp.full_like(m_ref, -jnp.inf)
        l_ref[...] = jnp.zeros_like(l_ref)
        acc_ref[...] = jnp.zeros_like(acc_ref)

    qb = q_ref[0]   # (tq, H*d_k)  lane-dense, 1/sqrt(d_k) already folded in
    kb = k_ref[0]   # (ts, H*d_k)
    vb = v_ref[0]   # (ts, H*d_v)

    # Static unroll over heads: all H heads processed in this grid step
    # (same DMA'd Q/K/V blocks), per-head math is plain 2-D MXU work.
    for h in range(n_heads):
        ksl = slice(h * d_k, (h + 1) * d_k)
        vsl = slice(h * d_v, (h + 1) * d_v)
        q_h = qb[:, ksl].astype(compute_dtype)
        k_h = kb[:, ksl].astype(compute_dtype)
        v_h = vb[:, vsl].astype(compute_dtype)

        # scores (tq, ts): contract last dims directly, no K transpose.
        s = lax.dot_general(q_h, k_h, (((1,), (1,)), ((), ())),
                            preferred_element_type=jnp.float32)

        m_prev = m_ref[h]                                     # (tq, 1)
        m_new = jnp.maximum(m_prev, jnp.max(s, axis=-1, keepdims=True))
        alpha = jnp.exp(m_prev - m_new)                       # (tq, 1), f32
        p = jnp.exp(s - m_new)                                # (tq, ts), f32
        l_ref[h] = alpha * l_ref[h] + jnp.sum(p, axis=-1, keepdims=True)

        # p cast to compute_dtype only as the PV MXU operand; accumulate in f32.
        pv = lax.dot_general(p.astype(compute_dtype), v_h,
                             (((1,), (0,)), ((), ())),
                             preferred_element_type=jnp.float32)  # (tq, d_v)
        acc_ref[:, vsl] = alpha * acc_ref[:, vsl] + pv
        m_ref[h] = m_new

    @pl.when(kv_i == pl.num_programs(2) - 1)
    def _finalize():
        # Normalize each head slice in place, then one full-width lane-dense
        # store (no concatenate / XLU relayout in the epilogue).
        for h in range(n_heads):
            vsl = slice(h * d_v, (h + 1) * d_v)
            if approx_recip:
                inv = pl.reciprocal(l_ref[h], approx=True)    # EUP slot
            else:
                inv = 1.0 / l_ref[h]
            acc_ref[:, vsl] = acc_ref[:, vsl] * inv
        o_ref[0] = acc_ref[...].astype(o_ref.dtype)


def flash_attention(q, k, v, n_heads, *, compute_dtype=_DEFAULT_COMPUTE_DTYPE,
                    tq=128, ts=256):
    """q: (B, L, H*d_k), k: (B, S, H*d_k), v: (B, S, H*d_v) -> (B, L, H*d_v)."""
    B, L, hdk = q.shape
    S = k.shape[1]
    hdv = v.shape[2]
    d_k = hdk // n_heads
    d_v = hdv // n_heads

    tq = _pick_tile(L, tq, 8)
    ts = _pick_tile(S, ts, 8)

    approx_recip = jnp.dtype(compute_dtype) != jnp.dtype(jnp.float32)

    kernel = partial(_flash_attn_kernel, n_heads=n_heads, d_k=d_k, d_v=d_v,
                     compute_dtype=compute_dtype, approx_recip=approx_recip)
    return pl.pallas_call(
        kernel,
        out_shape=jax.ShapeDtypeStruct((B, L, hdv), q.dtype),
        grid_spec=pltpu.PrefetchScalarGridSpec(
            num_scalar_prefetch=0,
            grid=(B, L // tq, S // ts),
            in_specs=[
                pl.BlockSpec((1, tq, hdk), lambda b, qi, ki: (b, qi, 0)),
                pl.BlockSpec((1, ts, hdk), lambda b, qi, ki: (b, ki, 0)),
                pl.BlockSpec((1, ts, hdv), lambda b, qi, ki: (b, ki, 0)),
            ],
            out_specs=pl.BlockSpec((1, tq, hdv), lambda b, qi, ki: (b, qi, 0)),
            scratch_shapes=[
                pltpu.VMEM((n_heads, tq, 1), jnp.float32),    # running max
                pltpu.VMEM((n_heads, tq, 1), jnp.float32),    # running sum
                pltpu.VMEM((tq, hdv), jnp.float32),           # lane-dense acc
            ],
        ),
        compiler_params=pltpu.CompilerParams(
            dimension_semantics=("parallel", "parallel", "arbitrary"),
            vmem_limit_bytes=_VMEM_LIMIT_BYTES,
        ),
    )(q, k, v)


# ----------------------------------------------------------------------------
# AttentionLayer forward (glue in plain JAX; all matmuls/softmax in Pallas)
# ----------------------------------------------------------------------------
def attention_layer_forward(params, queries, keys, values, attn_mask=None,
                            *, compute_dtype=_DEFAULT_COMPUTE_DTYPE):
    # TODO(synk): attn_mask (causal / padded sequences) is not supported by the
    # FullAttention kernel and is ignored.
    B, L, d_model = queries.shape
    _, S, _ = keys.shape
    H = params["n_heads"]

    hdk = params["wq"].shape[1]
    hdv = params["wv"].shape[1]
    d_k = hdk // H
    scale = 1.0 / math.sqrt(d_k)

    out_dtype = queries.dtype
    # q/k/v intermediates written once / read once -> keep them in the compute
    # dtype (bf16 by default) to halve that HBM traffic and the flash kernel's
    # double-buffered VMEM footprint.
    inter_dtype = compute_dtype

    # Fold 1/sqrt(d_k) into the query projection (one tiny weight-sized op) so
    # the flash kernel never rescales Q per head / per KV step.
    wq = params["wq"] * scale
    bq = params["bq"] * scale

    # Separate projections (no fused-QKV + post-projection slices: the XLA
    # slices cost a full extra HBM read+write of q/k/v, which is strictly more
    # bandwidth than re-reading the activations here).
    q = linear(queries.reshape(B * L, d_model), wq, bq,
               compute_dtype=compute_dtype, out_dtype=inter_dtype)
    k = linear(keys.reshape(B * S, d_model), params["wk"], params["bk"],
               compute_dtype=compute_dtype, out_dtype=inter_dtype)
    v = linear(values.reshape(B * S, d_model), params["wv"], params["bv"],
               compute_dtype=compute_dtype, out_dtype=inter_dtype)

    # Metadata-only reshapes (no transposes -> no extra HBM round trips).
    q = q.reshape(B, L, hdk)
    k = k.reshape(B, S, hdk)
    v = v.reshape(B, S, hdv)

    out = flash_attention(q, k, v, H, compute_dtype=compute_dtype)  # (B,L,H*dv)

    y = linear(out.reshape(B * L, hdv), params["wo"], params["bo"],
               compute_dtype=compute_dtype, out_dtype=out_dtype)
    return y.reshape(B, L, d_model)


def init_params(key, d_model, n_heads, d_keys=None, d_values=None):
    d_keys = d_keys or d_model // n_heads
    d_values = d_values or d_model // n_heads
    ks = jax.random.split(key, 8)
    scale_in = 1.0 / math.sqrt(d_model)
    scale_out = 1.0 / math.sqrt(d_values * n_heads)
    return {
        "n_heads": n_heads,
        "wq": jax.random.uniform(ks[0], (d_model, d_keys * n_heads),
                                 jnp.float32, -scale_in, scale_in),
        "bq": jax.random.uniform(ks[1], (d_keys * n_heads,),
                                 jnp.float32, -scale_in, scale_in),
        "wk": jax.random.uniform(ks[2], (d_model, d_keys * n_heads),
                                 jnp.float32, -scale_in, scale_in),
        "bk": jax.random.uniform(ks[3], (d_keys * n_heads,),
                                 jnp.float32, -scale_in, scale_in),
        "wv": jax.random.uniform(ks[4], (d_model, d_values * n_heads),
                                 jnp.float32, -scale_in, scale_in),
        "bv": jax.random.uniform(ks[5], (d_values * n_heads,),
                                 jnp.float32, -scale_in, scale_in),
        "wo": jax.random.uniform(ks[6], (d_values * n_heads, d_model),
                                 jnp.float32, -scale_out, scale_out),
        "bo": jax.random.uniform(ks[7], (d_model,),
                                 jnp.float32, -scale_out, scale_out),
    }


def _reference_forward(params, queries, keys, values):
    """Pure-JAX reference for sanity checking."""
    B, L, d_model = queries.shape
    _, S, _ = keys.shape
    H = params["n_heads"]
    q = (queries.reshape(B * L, d_model) @ params["wq"] + params["bq"]).reshape(B, L, H, -1)
    k = (keys.reshape(B * S, d_model) @ params["wk"] + params["bk"]).reshape(B, S, H, -1)
    v = (values.reshape(B * S, d_model) @ params["wv"] + params["bv"]).reshape(B, S, H, -1)
    d_k = q.shape[-1]
    s = jnp.einsum("blhd,bshd->bhls", q, k) / math.sqrt(d_k)
    a = jax.nn.softmax(s, axis=-1)
    o = jnp.einsum("bhls,bshd->blhd", a, v).reshape(B, L, -1)
    return (o @ params["wo"] + params["bo"]).reshape(B, L, d_model)


if __name__ == "__main__":
    B, L, S, d_model, n_heads = 2, 8, 8, 32, 4

    key = jax.random.PRNGKey(0)
    kq, kk, kv, kp = jax.random.split(key, 4)
    queries = jax.random.normal(kq, (B, L, d_model), jnp.float32)
    keys = jax.random.normal(kk, (B, S, d_model), jnp.float32)
    values = jax.random.normal(kv, (B, S, d_model), jnp.float32)
    params = init_params(kp, d_model, n_heads)

    ref = _reference_forward(params, queries, keys, values)

    # 1) default perf path: bf16 MXU operands, f32 accumulation / softmax stats
    out = attention_layer_forward(params, queries, keys, values, attn_mask=None)
    out = jax.block_until_ready(out)
    assert out.shape == (B, L, d_model)
    assert jnp.allclose(out, ref, atol=3e-2, rtol=3e-2), "bf16 cross-attn mismatch"

    # 2) strict f32 path (tight tolerance)
    out_f32 = attention_layer_forward(params, queries, keys, values,
                                      compute_dtype=jnp.float32)
    out_f32 = jax.block_until_ready(out_f32)
    assert jnp.allclose(out_f32, ref, atol=2e-3, rtol=2e-3), "f32 cross-attn mismatch"

    # 3) self-attention (same tensor for q/k/v)
    out_self = attention_layer_forward(params, queries, queries, queries)
    out_self = jax.block_until_ready(out_self)
    ref_self = _reference_forward(params, queries, queries, queries)
    assert jnp.allclose(out_self, ref_self, atol=3e-2, rtol=3e-2), "self-attn mismatch"

    print("KERNEL_OK")
</pallas_src>

<mosaic_0001>
module attributes {stable_mosaic.version = 11 : i64} {
  func.func @_linear_kernel(%arg0: i32, %arg1: i32, %arg2: i32, %arg3: memref<16x32xf32, #tpu.memory_space<vmem>>, %arg4: memref<32x32xf32, #tpu.memory_space<vmem>>, %arg5: memref<1x32xf32, #tpu.memory_space<vmem>>, %arg6: memref<16x32xbf16, #tpu.memory_space<vmem>>, %arg7: memref<16x32xf32, #tpu.memory_space<vmem>>) attributes {dimension_semantics = [#tpu.dimension_semantics<parallel>, #tpu.dimension_semantics<parallel>, #tpu.dimension_semantics<arbitrary>], iteration_bounds = array<i64: 1, 1, 1>, scalar_prefetch = 0 : i64, scratch_operands = 1 : i64, tpu.core_type = #tpu.core_type<tc>, window_params = [{transform_indices = @transform_0, window_bounds = array<i64: 16, 32>}, {transform_indices = @transform_1, window_bounds = array<i64: 32, 32>}, {transform_indices = @transform_2, window_bounds = array<i64: 1, 32>}, {transform_indices = @transform_3, window_bounds = array<i64: 16, 32>}]} {
    %c0_i32 = arith.constant 0 : i32
    %0 = arith.cmpi eq, %arg2, %c0_i32 : i32
    %1 = arith.extui %0 : i1 to i32
    %c0_i32_0 = arith.constant 0 : i32
    %2 = arith.cmpi ne, %1, %c0_i32_0 : i32
    scf.if %2 {
      %cst_10 = arith.constant 0.000000e+00 : f32
      %14 = vector.broadcast %cst_10 : f32 to vector<16x32xf32>
      %c0_11 = arith.constant 0 : index
      %c0_12 = arith.constant 0 : index
      %15 = vector.load %arg7[%c0_11, %c0_12] : memref<16x32xf32, #tpu.memory_space<vmem>>, vector<16x32xf32>
      tpu.vector_store %arg7[%c0_11, %c0_12], %14 {strides = array<i32>} : memref<16x32xf32, #tpu.memory_space<vmem>>, vector<16x32xf32>,
    } else {
    }
    %c0 = arith.constant 0 : index
    %c0_1 = arith.constant 0 : index
    %3 = vector.load %arg3[%c0, %c0_1] : memref<16x32xf32, #tpu.memory_space<vmem>>, vector<16x32xf32>
    %4 = arith.truncf %3 : vector<16x32xf32> to vector<16x32xbf16>
    %c0_2 = arith.constant 0 : index
    %c0_3 = arith.constant 0 : index
    %5 = vector.load %arg4[%c0_2, %c0_3] : memref<32x32xf32, #tpu.memory_space<vmem>>, vector<32x32xf32>
    %6 = arith.truncf %5 : vector<32x32xf32> to vector<32x32xbf16>
    %c0_4 = arith.constant 0 : index
    %c0_5 = arith.constant 0 : index
    %7 = vector.load %arg7[%c0_4, %c0_5] : memref<16x32xf32, #tpu.memory_space<vmem>>, vector<16x32xf32>
    %cst = arith.constant dense<0.000000e+00> : vector<16x32xf32>
    %8 = tpu.matmul %4, %6, %cst {dimension_numbers = #tpu.dot_dimension_numbers<[1], [0], [0], [1], [0, 0, 1, 1], [], []>} : vector<16x32xbf16>, vector<32x32xbf16>, vector<16x32xf32> -> vector<16x32xf32>
    %9 = arith.addf %7, %8 : vector<16x32xf32>
    %c0_6 = arith.constant 0 : index
    %c0_7 = arith.constant 0 : index
    %10 = vector.load %arg7[%c0_6, %c0_7] : memref<16x32xf32, #tpu.memory_space<vmem>>, vector<16x32xf32>
    tpu.vector_store %arg7[%c0_6, %c0_7], %9 {strides = array<i32>} : memref<16x32xf32, #tpu.memory_space<vmem>>, vector<16x32xf32>,
    %c0_i32_8 = arith.constant 0 : i32
    %11 = arith.cmpi eq, %arg2, %c0_i32_8 : i32
    %12 = arith.extui %11 : i1 to i32
    %c0_i32_9 = arith.constant 0 : i32
    %13 = arith.cmpi ne, %12, %c0_i32_9 : i32
    scf.if %13 {
      %c0_10 = arith.constant 0 : index
      %c0_11 = arith.constant 0 : index
      %14 = vector.load %arg7[%c0_10, %c0_11] : memref<16x32xf32, #tpu.memory_space<vmem>>, vector<16x32xf32>
      %c0_12 = arith.constant 0 : index
      %c0_13 = arith.constant 0 : index
      %15 = vector.load %arg5[%c0_12, %c0_13] : memref<1x32xf32, #tpu.memory_space<vmem>>, vector<1x32xf32>
      %16 = vector.broadcast %15 : vector<1x32xf32> to vector<16x32xf32>
      %17 = arith.addf %14, %16 : vector<16x32xf32>
      %18 = arith.truncf %17 : vector<16x32xf32> to vector<16x32xbf16>
      %c0_14 = arith.constant 0 : index
      %c0_15 = arith.constant 0 : index
      %19 = vector.load %arg6[%c0_14, %c0_15] : memref<16x32xbf16, #tpu.memory_space<vmem>>, vector<16x32xbf16>
      tpu.vector_store %arg6[%c0_14, %c0_15], %18 {strides = array<i32>} : memref<16x32xbf16, #tpu.memory_space<vmem>>, vector<16x32xbf16>,
    } else {
    }
    return
  }
  func.func @transform_0(%arg0: i32, %arg1: i32, %arg2: i32) -> (i32, i32) {
    %c0_i32 = arith.constant 0 : i32
    return %arg0, %arg2 : i32, i32
  }
  func.func @transform_1(%arg0: i32, %arg1: i32, %arg2: i32) -> (i32, i32) {
    %c0_i32 = arith.constant 0 : i32
    return %arg2, %arg1 : i32, i32
  }
  func.func @transform_2(%arg0: i32, %arg1: i32, %arg2: i32) -> (i32, i32) {
    %c0_i32 = arith.constant 0 : i32
    %c0_i32_0 = arith.constant 0 : i32
    return %c0_i32, %arg1 : i32, i32
  }
  func.func @transform_3(%arg0: i32, %arg1: i32, %arg2: i32) -> (i32, i32) {
    %c0_i32 = arith.constant 0 : i32
    return %arg0, %arg1 : i32, i32
  }
}

</mosaic_0001>

<llo_original>
// kernel: tpu_custom_call.1
$region0: #{tpu_custom_call.1}
  #allocation0 [shape = 'u32[]', space=smem, size = 0x4, offset = 0x4, fixed_abs, tag = 'smem constant byte address 0x4 - core index']
  #allocation1 [shape = 'u32[144,128]{1,0:T(1,128)}', space=vmem, size = 0x12000, scoped, tag = 'internal scratch']
  #allocation2 [shape = 'f32[16,32]{1,0:T(8,128)}', space=vmem, size = 0x2000, scoped, tag = 'scratch operand']
  %s0 = inlined_call_operand.hbm [shape: f32[16,32], index: 0, kind: input, shape index: {}]
  %s1 = inlined_call_operand.hbm [shape: f32[32,32], index: 1, kind: input, shape index: {}]
  %s2 = inlined_call_operand.vmem [shape: f32[1,32], index: 2, kind: input, shape index: {}]
  %s3 = inlined_call_operand.hbm [shape: bf16[16,32], index: 3, kind: output, shape index: {}]
  %s4 = sld [smem:[#allocation0]]
  $region38: #{tpu_custom_call.1} parent=0
    _
  %s6 = ssub.s32 1, %s4
  %s7 = scalar_select 0, %s6, %s4
  $region1: #{tpu_custom_call.1} parent=0
    #allocation3 [shape = 'u8[8192]{0}', space=vmem, size = 0x2000, scoped, tag = 'input window, operand 0, single buffered']
    #allocation4 [shape = 's32[1]{0}', space=sflag, size = 0x4, scoped, tag = 'scoped memory for tpu_custom_call.1']
    #allocation5 [shape = 's32[1]{0}', space=sflag, size = 0x4, scoped, tag = 'scoped memory for tpu_custom_call.1']
    #allocation6 [shape = 'u8[16384]{0}', space=vmem, size = 0x4000, scoped, tag = 'input window, operand 1, single buffered']
    #allocation7 [shape = 's32[1]{0}', space=sflag, size = 0x4, scoped, tag = 'scoped memory for tpu_custom_call.1']
    #allocation8 [shape = 'u8[4096]{0}', space=vmem, size = 0x1000, scoped, tag = 'output window, operand 0, single buffered']
    %8 = vsyncpa [#allocation4], 0
    %9 = vsyncpa [#allocation7], 0
    %10 = vsyncpa [#allocation5], 0
    // Predicated region
    $region2: #{tpu_custom_call.1} parent=1 // pred_check
      _
    $region3: #{tpu_custom_call.1} parent=1 // pred_check_branch
      %12 = sbr.rel (0) target = $region5
    $region4: #{tpu_custom_call.1} parent=1 // pred_region
      %s14 = ssub.s32 256, 256
      %15 = vsyncadd [#allocation4], %s14
      %s16 = sshll.u32 [#allocation3], 4
      %s17 = int_to_ptr.vmem [resolvable:$true] %s16
      %22 = dma.hbm_to_vmem [thread:$0]  %s0, 256, %s17, [#allocation4], 128, 128, 8
    $region5: #{tpu_custom_call.1} parent=1 // pred_fallthru
      _
    // Predicated region
    $region6: #{tpu_custom_call.1} parent=1 // pred_check
      _
    $region7: #{tpu_custom_call.1} parent=1 // pred_check_branch
      %24 = sbr.rel (0) target = $region9
    $region8: #{tpu_custom_call.1} parent=1 // pred_region
      %s26 = ssub.s32 512, 512
      %27 = vsyncadd [#allocation7], %s26
      %s28 = sshll.u32 [#allocation6], 4
      %s29 = int_to_ptr.vmem [resolvable:$true] %s28
      %34 = dma.hbm_to_vmem [thread:$0]  %s1, 512, %s29, [#allocation7], 128, 128, 8
    $region9: #{tpu_custom_call.1} parent=1 // pred_fallthru
      _
    // Predicated region
    $region10: #{tpu_custom_call.1} parent=1 // pred_check
      _
    $region11: #{tpu_custom_call.1} parent=1 // pred_check_branch
      %36 = sbr.rel (0) target = $region13
    $region12: #{tpu_custom_call.1} parent=1 // pred_region
      _
    $region13: #{tpu_custom_call.1} parent=1 // pred_fallthru
      _
    // Predicated region
    $region14: #{tpu_custom_call.1} parent=1 // pred_check
      _
    $region15: #{tpu_custom_call.1} parent=1 // pred_check_branch
      %38 = sbr.rel (0) target = $region17
    $region16: #{tpu_custom_call.1} parent=1 // pred_region
      %39 = dma.done [#allocation4], 256
    $region17: #{tpu_custom_call.1} parent=1 // pred_fallthru
      _
    // Predicated region
    $region18: #{tpu_custom_call.1} parent=1 // pred_check
      _
    $region19: #{tpu_custom_call.1} parent=1 // pred_check_branch
      %41 = sbr.rel (0) target = $region21
    $region20: #{tpu_custom_call.1} parent=1 // pred_region
      %42 = dma.done [#allocation7], 512
    $region21: #{tpu_custom_call.1} parent=1 // pred_fallthru
      _
    %p44 = scmp.eq.s32.totalorder 0, 0
    // Predicated region
    $region22: #{tpu_custom_call.1} parent=1 // pred_check
      %p45 = pneg %p44
    $region23: #{tpu_custom_call.1} parent=1 // pred_check_branch
      %47 = sbr.rel (%p45) target = $region25
    $region24: #{tpu_custom_call.1} parent=1 // pred_region
      %vm48 = vcmask 261120
      %49 = vst.msk [vmem:[#allocation2] sm:$0xff] %vm48, 0.0
      %50 = vst.msk [vmem:[#allocation2 + $0x8] sm:$0xff] %vm48, 0.0
    $region25: #{tpu_custom_call.1} parent=1 // pred_fallthru
      _
    %v51 = vld [vmem:[#allocation3] sm:$0xff]
    %v52 = vld [vmem:[#allocation3 + $0x8] sm:$0xff]
    %v53 = vpack.c.bf16 %v52, %v51
    %v54 = vld [vmem:[#allocation6] sm:$0xff]
    %v55 = vld [vmem:[#allocation6 + $0x8] sm:$0xff]
    %v56 = vld [vmem:[#allocation6 + $0x10] sm:$0xff]
    %v57 = vld [vmem:[#allocation6 + $0x18] sm:$0xff]
    %v58 = vpack.c.bf16 %v55, %v54
    %v59 = vpack.c.bf16 %v57, %v56
    %v60 = vld [vmem:[#allocation2] sm:$0xff]
    %v61 = vld [vmem:[#allocation2 + $0x8] sm:$0xff]
    %vm62 = vcmask 261120
    %v64 = vsel %vm62, %v53, 0
    %66 = vmatprep.subr.bf16.mxu0 0
    %67 = vmatpush1.bf16.msra.mxu0 0
    %68 = vmatprep.subr.bf16.mxu0 0
    %69 = vmatpush1.bf16.msra.mxu0 0
    %70 = vmatprep.subr.bf16.mxu0 0
    %71 = vmatpush1.bf16.msra.mxu0 0
    %72 = vmatprep.subr.bf16.mxu0 0
    %73 = vmatpush1.bf16.msra.mxu0 0
    %74 = vmatprep.subr.bf16.mxu0 0
    %75 = vmatpush1.bf16.msra.mxu0 0
    %76 = vmatprep.subr.bf16.mxu0 0
    %77 = vmatpush1.bf16.msra.mxu0 0
    %78 = vmatprep.subr.bf16.mxu0 0
    %79 = vmatpush1.bf16.msra.mxu0 %v59
    %80 = vmatprep.subr.bf16.mxu0 0
    %81 = vmatpush1.bf16.msra.mxu0 %v58
    %82 = vmatprep.subr.bf16.mxu0 0
    %83 = vmatpush2.bf16.msra.mxu0 0
    %84 = vmatprep.subr.bf16.mxu0 0
    %85 = vmatpush2.bf16.msra.mxu0 0
    %86 = vmatprep.subr.bf16.mxu0 0
    %87 = vmatpush2.bf16.msra.mxu0 0
    %88 = vmatprep.subr.bf16.mxu0 0
    %89 = vmatpush2.bf16.msra.mxu0 0
    %90 = vmatprep.subr.bf16.mxu0 0
    %91 = vmatpush2.bf16.msra.mxu0 0
    %92 = vmatprep.subr.bf16.mxu0 0
    %93 = vmatpush2.bf16.msra.mxu0 0
    %94 = vmatprep.subr.bf16.mxu0 0
    %95 = vmatpush2.bf16.msra.mxu0 0
    %96 = vmatprep.subr.bf16.mxu0 0
    %97 = vmatpush2.bf16.msra.mxu0 0
    %98 = vmatprep.mubr.bf16.mxu0 0
    %99 = vmatmul.mubr.bf16.gmra.mxu0 %v64
    %v100 = vpop.f32.mrf.mxu0
    %v101 = vadd.f32 0.0, %v100
    %v102 = vpop.f32.mrf.mxu0
    %v103 = vpop.f32.mrf.mxu0
    %v104 = vadd.f32 0.0, %v103
    %v105 = vpop.f32.mrf.mxu0
    %106 = vdwg.mxu0
    %v107 = vadd.f32 %v60, %v101
    %v108 = vadd.f32 %v61, %v104
    %109 = vst.msk [vmem:[#allocation2] sm:$0xff] %vm62, %v107
    %110 = vst.msk [vmem:[#allocation2 + $0x8] sm:$0xff] %vm62, %v108
    // Predicated region
    $region26: #{tpu_custom_call.1} parent=1 // pred_check
      %p111 = pneg %p44
    $region27: #{tpu_custom_call.1} parent=1 // pred_check_branch
      %113 = sbr.rel (%p111) target = $region29
    $region28: #{tpu_custom_call.1} parent=1 // pred_region
      %v114 = vld [vmem:[#allocation2] sm:$0xff]
      %v115 = vld [vmem:[#allocation2 + $0x8] sm:$0xff]
      %v116 = vld [vmem:[%s2] sm:$0x1]
      %v118 = vlaneseq
      %v119 = vshrl.u32 %v118, 7
      %v120 = vsub.s32 0, %v119
      %v121 = vrot.slane %v116, %v120
      %v123 = vadd.f32 %v114, %v121
      %v124 = vadd.f32 %v115, %v121
      %v125 = vpack.c.bf16 %v124, %v123
      %v127 = vunpack.c.l.b16 %v125
      %v128 = vunpack.c.h.b16 %v125
      %v129 = vpack.c.b16 %v127, %v127
      %v130 = vpack.c.b16 %v128, %v128
      %vm133 = vcmask 257024
      %134 = vst.msk [vmem:[#allocation8] sm:$0xf] %vm133, %v129
      %135 = vst.msk [vmem:[#allocation8 + $0x4] sm:$0xf] %vm133, %v130
    $region29: #{tpu_custom_call.1} parent=1 // pred_fallthru
      _
    // Predicated region
    $region30: #{tpu_custom_call.1} parent=1 // pred_check
      _
    $region31: #{tpu_custom_call.1} parent=1 // pred_check_branch
      %137 = sbr.rel (0) target = $region33
    $region32: #{tpu_custom_call.1} parent=1 // pred_region
      %s139 = ssub.s32 128, 128
      %140 = vsyncadd [#allocation5], %s139
      %s141 = sshll.u32 [#allocation8], 4
      %s142 = int_to_ptr.vmem [resolvable:$true] %s141
      %147 = dma.vmem_to_hbm [thread:$0]  %s142, 128, %s3, [#allocation5], 64, 64, 4
    $region33: #{tpu_custom_call.1} parent=1 // pred_fallthru
      _
    // Predicated region
    $region34: #{tpu_custom_call.1} parent=1 // pred_check
      _
    $region35: #{tpu_custom_call.1} parent=1 // pred_check_branch
      %149 = sbr.rel (0) target = $region37
    $region36: #{tpu_custom_call.1} parent=1 // pred_region
      %150 = dma.done [#allocation5], 128
    $region37: #{tpu_custom_call.1} parent=1 // pred_fallthru
      _
    %151 = vsyncpa [#allocation4], 1
    %152 = vsyncpa [#allocation7], 1
    %153 = vsyncpa [#allocation5], 1

</llo_original>
